<compile_context>
chip_gen: v5e
topology: v5e:2x2
jax: 0.10.0
libtpu: 0.0.40
codegen_flags: <defaults>
</compile_context>

<pallas_src>
import functools

import jax
import jax.numpy as jnp
from jax.experimental import pallas as pl
from jax.experimental.pallas import tpu as pltpu


def _pool_partial_kernel(batch_ref, x_ref, sums_out_ref, cnts_out_ref,
                         acc_ref, cnt_ref, *, n_nodes, tiles_per_split):
    # batch_ref    : (1, TILE_N) int32  -- graph id per node (pad rows = B)
    # x_ref        : (TILE_N, C) f32    -- node features, streamed straight from HBM
    # sums_out_ref : (1, B, C)  f32     -- per-split partial feature sums
    # cnts_out_ref : (1, B, 1)  f32     -- per-split partial node counts
    # acc_ref      : (B, C) f32 scratch -- running feature-sum accumulator
    # cnt_ref      : (B, 1) f32 scratch -- running node-count accumulator
    s = pl.program_id(0)          # split (parallel across TensorCores on v7x)
    t = pl.program_id(1)          # node tile within the split (reduction)
    tile_n, channels = x_ref.shape
    num_graphs = acc_ref.shape[0]

    @pl.when(t == 0)
    def _():
        acc_ref[...] = jnp.zeros_like(acc_ref)
        cnt_ref[...] = jnp.zeros_like(cnt_ref)

    # One-hot over graph ids; padded batch rows carry id == B so they drop out.
    batch = batch_ref[...]                                             # (1, TILE_N)
    graph_ids = jax.lax.broadcasted_iota(jnp.int32, (num_graphs, tile_n), 0)
    one_hot = (graph_ids == batch).astype(jnp.float32)                 # (B, TILE_N)

    # Mask rows past the real node count: ragged last tile / fully padded
    # logical tiles may hold garbage (possibly NaN), and 0-weights in the
    # matmul would not remove NaN, so select (not multiply).
    base = (s * tiles_per_split + t) * tile_n
    row = jax.lax.broadcasted_iota(jnp.int32, (tile_n, channels), 0) + base
    x = jnp.where(row < n_nodes, x_ref[...], 0.0)                      # (TILE_N, C)

    # Feature sums on the MXU; node counts on the XLU (free slot vs. the MXU).
    acc_ref[...] += jnp.dot(one_hot, x, preferred_element_type=jnp.float32)
    cnt_ref[...] += jnp.sum(one_hot, axis=1, keepdims=True)

    @pl.when(t == pl.num_programs(1) - 1)
    def _():
        sums_out_ref[0] = acc_ref[...]
        cnts_out_ref[0] = cnt_ref[...]


def _epilogue_kernel(sums_ref, cnts_ref, w_ref, b_ref, out_ref):
    # sums_ref: (S, B, C); cnts_ref: (S, B, 1); w_ref: (C, K); b_ref: (1, K)
    # out_ref : (B, K) log-probabilities per graph.
    sums = jnp.sum(sums_ref[...], axis=0)                              # (B, C)
    counts = jnp.sum(cnts_ref[...], axis=0)                            # (B, 1)
    inv = pl.reciprocal(jnp.maximum(counts, 1.0), approx=False)        # exact
    pooled = sums * inv                                                # (B, C)
    logits = jnp.dot(pooled, w_ref[...],
                     preferred_element_type=jnp.float32) + b_ref[...]  # (B, K)
    m = jnp.max(logits, axis=1, keepdims=True)
    z = logits - m
    out_ref[...] = z - jnp.log(jnp.sum(jnp.exp(z), axis=1, keepdims=True))


def _round_up(v, m):
    return -(-v // m) * m


@functools.partial(jax.jit, static_argnames=("num_graphs", "tile_n", "num_splits"))
def action_recognizer_forward(data, batch, weight_t, bias, *, num_graphs,
                              tile_n=8192, num_splits=2):
    """data: (N, C) f32; batch: (N,) int32 in [0, num_graphs);
    weight_t: (C, K) f32; bias: (K,) f32 -> (num_graphs, K) log-probs."""
    n_nodes, channels = data.shape
    num_classes = weight_t.shape[1]

    # ---- node tile size: lane-aligned (x128), capped by a VMEM budget ----
    # double-buffered x + masked-x temp + double-buffered batch ids + one-hot.
    per_row_bytes = 4 * (3 * channels + 2 + 2 * num_graphs)
    budget_bytes = 20 * 1024 * 1024            # headroom under the 32 MiB limit
    cap = max(128, (budget_bytes // per_row_bytes) // 128 * 128)
    tn = max(128, _round_up(tile_n, 128))      # enforce tile_n % 128 == 0
    tn = min(tn, cap, max(128, _round_up(n_nodes, 128)))

    n_blocks = -(-n_nodes // tn)               # real node tiles in `data`
    splits = max(1, min(num_splits, n_blocks)) # v7x: shard across TensorCores
    tiles_per_split = -(-n_blocks // splits)
    n_total = splits * tiles_per_split * tn

    # Pad only the cheap (N,) batch-id vector; padding rows get an
    # out-of-range graph id so they contribute nothing.
    batch_p = batch.astype(jnp.int32)
    if n_total != n_nodes:
        batch_p = jnp.pad(batch_p, (0, n_total - n_nodes),
                          constant_values=num_graphs)
    batch2d = batch_p.reshape(1, n_total)

    data_f32 = data.astype(jnp.float32)        # no concat/pad copy of features
    weight_t = weight_t.astype(jnp.float32)
    bias2d = bias.astype(jnp.float32).reshape(1, num_classes)

    last_block = n_blocks - 1                  # clamp so DMA windows start in bounds

    kernel = functools.partial(_pool_partial_kernel,
                               n_nodes=n_nodes,
                               tiles_per_split=tiles_per_split)

    grid_spec = pltpu.PrefetchScalarGridSpec(
        num_scalar_prefetch=0,
        grid=(splits, tiles_per_split),
        in_specs=[
            pl.BlockSpec((1, tn),
                         lambda s, t: (0, s * tiles_per_split + t)),
            pl.BlockSpec((tn, channels),
                         lambda s, t: (jnp.minimum(s * tiles_per_split + t,
                                                   last_block), 0)),
        ],
        out_specs=[
            pl.BlockSpec((1, num_graphs, channels), lambda s, t: (s, 0, 0)),
            pl.BlockSpec((1, num_graphs, 1), lambda s, t: (s, 0, 0)),
        ],
        scratch_shapes=[
            pltpu.VMEM((num_graphs, channels), jnp.float32),
            pltpu.VMEM((num_graphs, 1), jnp.float32),
        ],
    )

    sums_part, cnts_part = pl.pallas_call(
        kernel,
        out_shape=(
            jax.ShapeDtypeStruct((splits, num_graphs, channels), jnp.float32),
            jax.ShapeDtypeStruct((splits, num_graphs, 1), jnp.float32),
        ),
        grid_spec=grid_spec,
        compiler_params=pltpu.CompilerParams(
            dimension_semantics=("parallel", "arbitrary"),
            vmem_limit_bytes=32 * 1024 * 1024,     # safe on v7x (64 MiB phys)
        ),
        cost_estimate=pl.CostEstimate(
            flops=2 * n_total * num_graphs * (channels + 1),
            transcendentals=0,
            bytes_accessed=(n_nodes * channels * 4 + n_total * 4
                            + splits * num_graphs * (channels + 1) * 4),
        ),
    )(batch2d, data_f32)

    # Tiny epilogue: combine split partials, mean, Linear, LogSoftmax.
    return pl.pallas_call(
        _epilogue_kernel,
        out_shape=jax.ShapeDtypeStruct((num_graphs, num_classes), jnp.float32),
    )(sums_part, cnts_part, weight_t, bias2d)


def _reference_forward(data, batch, weight_t, bias, num_graphs):
    # Pure-JAX reference for a sanity check.
    one_hot = jax.nn.one_hot(batch, num_graphs, dtype=jnp.float32).T   # (B, N)
    sums = one_hot @ data
    counts = jnp.maximum(one_hot.sum(axis=1, keepdims=True), 1.0)
    pooled = sums / counts
    logits = pooled @ weight_t + bias[None, :]
    return jax.nn.log_softmax(logits, axis=1)


if __name__ == "__main__":
    # Small, deterministic synthetic problem (graph-batch of node features).
    channels = 21      # matches the module's `channels`
    num_classes = 6    # dataset.num_classes (synthetic)
    num_graphs = 4     # number of graphs in the mini-batch
    n_nodes = 32       # total nodes across all graphs

    key = jax.random.PRNGKey(0)
    k_data, k_batch, k_w, k_b = jax.random.split(key, 4)

    data = jax.random.normal(k_data, (n_nodes, channels), dtype=jnp.float32)
    batch = jax.random.randint(k_batch, (n_nodes,), 0, num_graphs, dtype=jnp.int32)

    # Deterministic Linear(channels, num_classes) params (kaiming-uniform-ish).
    bound = 1.0 / jnp.sqrt(channels)
    weight = jax.random.uniform(k_w, (num_classes, channels),
                                minval=-bound, maxval=bound, dtype=jnp.float32)
    bias = jax.random.uniform(k_b, (num_classes,),
                              minval=-bound, maxval=bound, dtype=jnp.float32)
    weight_t = weight.T  # (C, K) layout for the kernel

    out = action_recognizer_forward(data, batch, weight_t, bias,
                                    num_graphs=num_graphs)
    out = jax.block_until_ready(out)

    ref = _reference_forward(data, batch, weight_t, bias, num_graphs)
    assert out.shape == (num_graphs, num_classes)
    assert jnp.allclose(out, ref, atol=1e-5, rtol=1e-5), "mismatch vs JAX reference"

    # Scaling smoke-test: larger N exercising multiple node tiles, two splits,
    # a ragged last tile and a fully-padded logical tile (clamped index map).
    n_big = 4096 + 200
    kd2, kb2 = jax.random.split(jax.random.PRNGKey(1))
    data_big = jax.random.normal(kd2, (n_big, channels), dtype=jnp.float32)
    batch_big = jax.random.randint(kb2, (n_big,), 0, num_graphs, dtype=jnp.int32)
    ref_big = _reference_forward(data_big, batch_big, weight_t, bias, num_graphs)

    out_big = jax.block_until_ready(
        action_recognizer_forward(data_big, batch_big, weight_t, bias,
                                  num_graphs=num_graphs, tile_n=1024,
                                  num_splits=2))
    assert jnp.allclose(out_big, ref_big, atol=1e-4, rtol=1e-4), \
        "mismatch vs JAX reference (tiled, split path)"

    # Default big-tile path (single partial tile, one split).
    out_big2 = jax.block_until_ready(
        action_recognizer_forward(data_big, batch_big, weight_t, bias,
                                  num_graphs=num_graphs))
    assert jnp.allclose(out_big2, ref_big, atol=1e-4, rtol=1e-4), \
        "mismatch vs JAX reference (big-tile path)"

    print("KERNEL_OK")
</pallas_src>

<mosaic_0001>
module attributes {stable_mosaic.version = 11 : i64} {
  func.func @_pool_partial_kernel(%arg0: i32, %arg1: i32, %arg2: memref<1x128xi32, #tpu.memory_space<vmem>>, %arg3: memref<128x21xf32, #tpu.memory_space<vmem>>, %arg4: memref<1x4x21xf32, #tpu.memory_space<vmem>>, %arg5: memref<1x4x1xf32, #tpu.memory_space<vmem>>, %arg6: memref<4x21xf32, #tpu.memory_space<vmem>>, %arg7: memref<4x1xf32, #tpu.memory_space<vmem>>) attributes {dimension_semantics = [#tpu.dimension_semantics<parallel>, #tpu.dimension_semantics<arbitrary>], iteration_bounds = array<i64: 1, 1>, scalar_prefetch = 0 : i64, scratch_operands = 2 : i64, tpu.core_type = #tpu.core_type<tc>, window_params = [{transform_indices = @transform_0, window_bounds = array<i64: 1, 128>}, {transform_indices = @transform_1, window_bounds = array<i64: 128, 21>}, {transform_indices = @transform_2, window_bounds = array<i64: 1, 4, 21>}, {transform_indices = @transform_3, window_bounds = array<i64: 1, 4, 1>}]} {
    %c0_i32 = arith.constant 0 : i32
    %0 = arith.cmpi eq, %arg1, %c0_i32 : i32
    %1 = arith.extui %0 : i1 to i32
    %c0_i32_0 = arith.constant 0 : i32
    %2 = arith.cmpi ne, %1, %c0_i32_0 : i32
    scf.if %2 {
      %cst_16 = arith.constant 0.000000e+00 : f32
      %32 = vector.broadcast %cst_16 : f32 to vector<4x21xf32>
      %c0_17 = arith.constant 0 : index
      %c0_18 = arith.constant 0 : index
      %33 = vector.load %arg6[%c0_17, %c0_18] : memref<4x21xf32, #tpu.memory_space<vmem>>, vector<4x21xf32>
      tpu.vector_store %arg6[%c0_17, %c0_18], %32 {strides = array<i32>} : memref<4x21xf32, #tpu.memory_space<vmem>>, vector<4x21xf32>,
      %cst_19 = arith.constant 0.000000e+00 : f32
      %34 = vector.broadcast %cst_19 : f32 to vector<4x1xf32>
      %c0_20 = arith.constant 0 : index
      %c0_21 = arith.constant 0 : index
      %35 = vector.load %arg7[%c0_20, %c0_21] : memref<4x1xf32, #tpu.memory_space<vmem>>, vector<4x1xf32>
      tpu.vector_store %arg7[%c0_20, %c0_21], %34 {strides = array<i32>} : memref<4x1xf32, #tpu.memory_space<vmem>>, vector<4x1xf32>,
    } else {
    }
    %c0 = arith.constant 0 : index
    %c0_1 = arith.constant 0 : index
    %3 = vector.load %arg2[%c0, %c0_1] : memref<1x128xi32, #tpu.memory_space<vmem>>, vector<1x128xi32>
    %4 = tpu.iota {dimensions = array<i32: 0>} : vector<4x128xi32>
    %5 = vector.broadcast %3 : vector<1x128xi32> to vector<4x128xi32>
    %6 = arith.cmpi eq, %4, %5 : vector<4x128xi32>
    %7 = arith.extui %6 : vector<4x128xi1> to vector<4x128xi32>
    %8 = arith.sitofp %7 : vector<4x128xi32> to vector<4x128xf32>
    %c1_i32 = arith.constant 1 : i32
    %9 = arith.muli %arg0, %c1_i32 : i32
    %10 = arith.addi %9, %arg1 : i32
    %c128_i32 = arith.constant 128 : i32
    %11 = arith.muli %10, %c128_i32 : i32
    %12 = tpu.iota {dimensions = array<i32: 0>} : vector<128x21xi32>
    %13 = vector.broadcast %11 : i32 to vector<128x21xi32>
    %14 = arith.addi %12, %13 : vector<128x21xi32>
    %c32_i32 = arith.constant 32 : i32
    %15 = vector.broadcast %c32_i32 : i32 to vector<128x21xi32>
    %16 = arith.cmpi slt, %14, %15 : vector<128x21xi32>
    %c0_2 = arith.constant 0 : index
    %c0_3 = arith.constant 0 : index
    %17 = vector.load %arg3[%c0_2, %c0_3] : memref<128x21xf32, #tpu.memory_space<vmem>>, vector<128x21xf32>
    %cst = arith.constant 0.000000e+00 : f32
    %18 = vector.broadcast %cst : f32 to vector<128x21xf32>
    %19 = arith.select %16, %17, %18 : vector<128x21xi1>, vector<128x21xf32>
    %c0_4 = arith.constant 0 : index
    %c0_5 = arith.constant 0 : index
    %20 = vector.load %arg6[%c0_4, %c0_5] : memref<4x21xf32, #tpu.memory_space<vmem>>, vector<4x21xf32>
    %cst_6 = arith.constant dense<0.000000e+00> : vector<4x21xf32>
    %21 = tpu.matmul %8, %19, %cst_6 {dimension_numbers = #tpu.dot_dimension_numbers<[1], [0], [0], [1], [0, 0, 1, 1], [], []>} : vector<4x128xf32>, vector<128x21xf32>, vector<4x21xf32> -> vector<4x21xf32>
    %22 = arith.addf %20, %21 : vector<4x21xf32>
    %c0_7 = arith.constant 0 : index
    %c0_8 = arith.constant 0 : index
    %23 = vector.load %arg6[%c0_7, %c0_8] : memref<4x21xf32, #tpu.memory_space<vmem>>, vector<4x21xf32>
    tpu.vector_store %arg6[%c0_7, %c0_8], %22 {strides = array<i32>} : memref<4x21xf32, #tpu.memory_space<vmem>>, vector<4x21xf32>,
    %c0_9 = arith.constant 0 : index
    %c0_10 = arith.constant 0 : index
    %24 = vector.load %arg7[%c0_9, %c0_10] : memref<4x1xf32, #tpu.memory_space<vmem>>, vector<4x1xf32>
    %cst_11 = arith.constant dense<0.000000e+00> : vector<4xf32>
    %25 = vector.multi_reduction <add>, %8, %cst_11 [1] : vector<4x128xf32> to vector<4xf32>
    %26 = vector.shape_cast %25 : vector<4xf32> to vector<4x1xf32>
    %27 = arith.addf %24, %26 : vector<4x1xf32>
    %c0_12 = arith.constant 0 : index
    %c0_13 = arith.constant 0 : index
    %28 = vector.load %arg7[%c0_12, %c0_13] : memref<4x1xf32, #tpu.memory_space<vmem>>, vector<4x1xf32>
    tpu.vector_store %arg7[%c0_12, %c0_13], %27 {strides = array<i32>} : memref<4x1xf32, #tpu.memory_space<vmem>>, vector<4x1xf32>,
    %c0_i32_14 = arith.constant 0 : i32
    %29 = arith.cmpi eq, %arg1, %c0_i32_14 : i32
    %30 = arith.extui %29 : i1 to i32
    %c0_i32_15 = arith.constant 0 : i32
    %31 = arith.cmpi ne, %30, %c0_i32_15 : i32
    scf.if %31 {
      %c0_16 = arith.constant 0 : index
      %c0_17 = arith.constant 0 : index
      %32 = vector.load %arg6[%c0_16, %c0_17] : memref<4x21xf32, #tpu.memory_space<vmem>>, vector<4x21xf32>
      %c0_18 = arith.constant 0 : index
      %c0_19 = arith.constant 0 : index
      %c0_20 = arith.constant 0 : index
      %33 = vector.load %arg4[%c0_18, %c0_19, %c0_20] : memref<1x4x21xf32, #tpu.memory_space<vmem>>, vector<1x4x21xf32>
      %34 = vector.shape_cast %33 : vector<1x4x21xf32> to vector<4x21xf32>
      %35 = vector.shape_cast %32 : vector<4x21xf32> to vector<1x4x21xf32>
      tpu.vector_store %arg4[%c0_18, %c0_19, %c0_20], %35 {strides = array<i32>} : memref<1x4x21xf32, #tpu.memory_space<vmem>>, vector<1x4x21xf32>,
      %c0_21 = arith.constant 0 : index
      %c0_22 = arith.constant 0 : index
      %36 = vector.load %arg7[%c0_21, %c0_22] : memref<4x1xf32, #tpu.memory_space<vmem>>, vector<4x1xf32>
      %c0_23 = arith.constant 0 : index
      %c0_24 = arith.constant 0 : index
      %c0_25 = arith.constant 0 : index
      %37 = vector.load %arg5[%c0_23, %c0_24, %c0_25] : memref<1x4x1xf32, #tpu.memory_space<vmem>>, vector<1x4x1xf32>
      %38 = vector.shape_cast %37 : vector<1x4x1xf32> to vector<4x1xf32>
      %39 = vector.shape_cast %36 : vector<4x1xf32> to vector<1x4x1xf32>
      tpu.vector_store %arg5[%c0_23, %c0_24, %c0_25], %39 {strides = array<i32>} : memref<1x4x1xf32, #tpu.memory_space<vmem>>, vector<1x4x1xf32>,
    } else {
    }
    return
  }
  func.func @transform_0(%arg0: i32, %arg1: i32) -> (i32, i32) {
    %c1_i32 = arith.constant 1 : i32
    %0 = arith.muli %arg0, %c1_i32 : i32
    %1 = arith.addi %0, %arg1 : i32
    %c0_i32 = arith.constant 0 : i32
    %c0_i32_0 = arith.constant 0 : i32
    return %c0_i32, %1 : i32, i32
  }
  func.func @transform_1(%arg0: i32, %arg1: i32) -> (i32, i32) {
    %c1_i32 = arith.constant 1 : i32
    %0 = arith.muli %arg0, %c1_i32 : i32
    %1 = arith.addi %0, %arg1 : i32
    %c0_i32 = arith.constant 0 : i32
    %2 = arith.minsi %1, %c0_i32 : i32
    %c0_i32_0 = arith.constant 0 : i32
    %c0_i32_1 = arith.constant 0 : i32
    return %2, %c0_i32_0 : i32, i32
  }
  func.func @transform_2(%arg0: i32, %arg1: i32) -> (i32, i32, i32) {
    %c0_i32 = arith.constant 0 : i32
    %c0_i32_0 = arith.constant 0 : i32
    %c0_i32_1 = arith.constant 0 : i32
    return %arg0, %c0_i32, %c0_i32_0 : i32, i32, i32
  }
  func.func @transform_3(%arg0: i32, %arg1: i32) -> (i32, i32, i32) {
    %c0_i32 = arith.constant 0 : i32
    %c0_i32_0 = arith.constant 0 : i32
    %c0_i32_1 = arith.constant 0 : i32
    return %arg0, %c0_i32, %c0_i32_0 : i32, i32, i32
  }
}

module attributes {stable_mosaic.version = 11 : i64} {
  func.func @_epilogue_kernel(%arg0: memref<1x4x21xf32, #tpu.memory_space<vmem>>, %arg1: memref<1x4x1xf32, #tpu.memory_space<vmem>>, %arg2: memref<21x6xf32, #tpu.memory_space<vmem>>, %arg3: memref<1x6xf32, #tpu.memory_space<vmem>>, %arg4: memref<4x6xf32, #tpu.memory_space<vmem>>) attributes {dimension_semantics = [], scalar_prefetch = 0 : i64, scratch_operands = 0 : i64, tpu.core_type = #tpu.core_type<tc>} {
    %c0 = arith.constant 0 : index
    %c0_0 = arith.constant 0 : index
    %c0_1 = arith.constant 0 : index
    %0 = vector.load %arg0[%c0, %c0_0, %c0_1] : memref<1x4x21xf32, #tpu.memory_space<vmem>>, vector<1x4x21xf32>
    %cst = arith.constant dense<0.000000e+00> : vector<4x21xf32>
    %1 = vector.multi_reduction <add>, %0, %cst [0] : vector<1x4x21xf32> to vector<4x21xf32>
    %c0_2 = arith.constant 0 : index
    %c0_3 = arith.constant 0 : index
    %c0_4 = arith.constant 0 : index
    %2 = vector.load %arg1[%c0_2, %c0_3, %c0_4] : memref<1x4x1xf32, #tpu.memory_space<vmem>>, vector<1x4x1xf32>
    %cst_5 = arith.constant dense<0.000000e+00> : vector<4x1xf32>
    %3 = vector.multi_reduction <add>, %2, %cst_5 [0] : vector<1x4x1xf32> to vector<4x1xf32>
    %cst_6 = arith.constant 1.000000e+00 : f32
    %4 = vector.broadcast %cst_6 : f32 to vector<4x1xf32>
    %5 = arith.maximumf %3, %4 : vector<4x1xf32>
    %6 = tpu.reciprocal %5 : vector<4x1xf32> -> vector<4x1xf32>
    %7 = vector.broadcast %6 : vector<4x1xf32> to vector<4x21xf32>
    %8 = arith.mulf %1, %7 : vector<4x21xf32>
    %c0_7 = arith.constant 0 : index
    %c0_8 = arith.constant 0 : index
    %9 = vector.load %arg2[%c0_7, %c0_8] : memref<21x6xf32, #tpu.memory_space<vmem>>, vector<21x6xf32>
    %cst_9 = arith.constant dense<0.000000e+00> : vector<4x6xf32>
    %10 = tpu.matmul %8, %9, %cst_9 {dimension_numbers = #tpu.dot_dimension_numbers<[1], [0], [0], [1], [0, 0, 1, 1], [], []>} : vector<4x21xf32>, vector<21x6xf32>, vector<4x6xf32> -> vector<4x6xf32>
    %c0_10 = arith.constant 0 : index
    %c0_11 = arith.constant 0 : index
    %11 = vector.load %arg3[%c0_10, %c0_11] : memref<1x6xf32, #tpu.memory_space<vmem>>, vector<1x6xf32>
    %12 = vector.broadcast %11 : vector<1x6xf32> to vector<4x6xf32>
    %13 = arith.addf %10, %12 : vector<4x6xf32>
    %cst_12 = arith.constant dense<0xFF800000> : vector<4xf32>
    %14 = vector.multi_reduction <maximumf>, %13, %cst_12 [1] : vector<4x6xf32> to vector<4xf32>
    %15 = vector.shape_cast %14 : vector<4xf32> to vector<4x1xf32>
    %16 = vector.broadcast %15 : vector<4x1xf32> to vector<4x6xf32>
    %17 = arith.subf %13, %16 : vector<4x6xf32>
    %18 = math.exp %17 : vector<4x6xf32>
    %cst_13 = arith.constant dense<0.000000e+00> : vector<4xf32>
    %19 = vector.multi_reduction <add>, %18, %cst_13 [1] : vector<4x6xf32> to vector<4xf32>
    %20 = vector.shape_cast %19 : vector<4xf32> to vector<4x1xf32>
    %21 = math.log %20 : vector<4x1xf32>
    %22 = vector.broadcast %21 : vector<4x1xf32> to vector<4x6xf32>
    %23 = arith.subf %17, %22 : vector<4x6xf32>
    %c0_14 = arith.constant 0 : index
    %c0_15 = arith.constant 0 : index
    %24 = vector.load %arg4[%c0_14, %c0_15] : memref<4x6xf32, #tpu.memory_space<vmem>>, vector<4x6xf32>
    tpu.vector_store %arg4[%c0_14, %c0_15], %23 {strides = array<i32>} : memref<4x6xf32, #tpu.memory_space<vmem>>, vector<4x6xf32>,
    return
  }
}

</mosaic_0001>

<llo_original>
// kernel: action_recognizer_forward.3
$region0: #{action_recognizer_forward.3}
  #allocation0 [shape = 'u32[]', space=smem, size = 0x4, offset = 0x4, fixed_abs, tag = 'smem constant byte address 0x4 - core index']
  #allocation1 [shape = 'u32[72,128]{1,0:T(1,128)}', space=vmem, size = 0x9000, scoped, tag = 'internal scratch']
  %s0 = inlined_call_operand.vmem [shape: f32[1,4,21], index: 0, kind: input, shape index: {}]
  %s1 = inlined_call_operand.vmem [shape: f32[1,4,1], index: 1, kind: input, shape index: {}]
  %s2 = inlined_call_operand.vmem [shape: f32[21,6], index: 2, kind: input, shape index: {}]
  %s3 = inlined_call_operand.vmem [shape: f32[1,6], index: 3, kind: input, shape index: {}]
  %s4 = inlined_call_operand.hbm [shape: f32[4,6], index: 4, kind: output, shape index: {}]
  %s5 = sld [smem:[#allocation0]]
  $region26: #{action_recognizer_forward.3} parent=0
    _
  %s7 = ssub.s32 1, %s5
  %s8 = scalar_select 0, %s7, %s5
  $region1: #{action_recognizer_forward.3} parent=0
    #allocation2 [shape = 'u8[2048]{0}', space=vmem, size = 0x800, scoped, tag = 'output window, operand 0, single buffered']
    #allocation3 [shape = 's32[1]{0}', space=sflag, size = 0x4, scoped, tag = 'scoped memory for action_recognizer_forward.3']
    %9 = vsyncpa [#allocation3], 0
    // Predicated region
    $region2: #{action_recognizer_forward.3} parent=1 // pred_check
      _
    $region3: #{action_recognizer_forward.3} parent=1 // pred_check_branch
      %11 = sbr.rel (0) target = $region5
    $region4: #{action_recognizer_forward.3} parent=1 // pred_region
      _
    $region5: #{action_recognizer_forward.3} parent=1 // pred_fallthru
      _
    // Predicated region
    $region6: #{action_recognizer_forward.3} parent=1 // pred_check
      _
    $region7: #{action_recognizer_forward.3} parent=1 // pred_check_branch
      %13 = sbr.rel (0) target = $region9
    $region8: #{action_recognizer_forward.3} parent=1 // pred_region
      _
    $region9: #{action_recognizer_forward.3} parent=1 // pred_fallthru
      _
    // Predicated region
    $region10: #{action_recognizer_forward.3} parent=1 // pred_check
      _
    $region11: #{action_recognizer_forward.3} parent=1 // pred_check_branch
      %15 = sbr.rel (0) target = $region13
    $region12: #{action_recognizer_forward.3} parent=1 // pred_region
      _
    $region13: #{action_recognizer_forward.3} parent=1 // pred_fallthru
      _
    // Predicated region
    $region14: #{action_recognizer_forward.3} parent=1 // pred_check
      _
    $region15: #{action_recognizer_forward.3} parent=1 // pred_check_branch
      %17 = sbr.rel (0) target = $region17
    $region16: #{action_recognizer_forward.3} parent=1 // pred_region
      _
    $region17: #{action_recognizer_forward.3} parent=1 // pred_fallthru
      _
    %v18 = vld [vmem:[%s0] sm:$0xf]
    %v19 = vadd.f32 %v18, 0.0
    %v20 = vld [vmem:[%s1] sm:$0xf]
    %v21 = vadd.f32 %v20, 0.0
    %v22 = vmax.f32 %v21, 1.0
    %v23 = vrcp.pop %v22
    %v24 = vmul.f32 %v22, %v23
    %v25 = vsub.f32 1.0, %v24
    %v26 = vmul.f32 %v23, %v25
    %v27 = vadd.f32 %v23, %v26
    %vm28 = vweird.f32 %v22
    %vm29 = vweird.f32 %v23
    %vm30 = vmor %vm28, %vm29
    %v31 = vsel %vm30, %v23, %v27
    %v32 = vand.u32 2147483647, %v22
    %vm33 = vcmp.eq.f32.partialorder %v32, 8.507059e+37
    %v34 = vand.u32 %v22, 2147483648
    %v35 = vor.u32 1.1754944e-38, %v34
    %v36 = vsel %vm33, %v35, %v31
    %38 = vset.pattern.permute.xlu0 0
    %39 = vperm.xlu0 %38, %v36
    %v40 = vpop.permute.xlu0 %39
    %v42 = vmul.f32 %v19, %v40
    %v43 = vld [vmem:[%s2] sm:$0xff]
    %v44 = vld [vmem:[%s2 + $0x8] sm:$0xff]
    %v45 = vld [vmem:[%s2 + $0x10] sm:$0x1f]
    %v46 = vld [vmem:[%s3] sm:$0x1]
    %v48 = vperm.slane %v46, 0
    %vm50 = vcmask 171008
    %v52 = vsel %vm50, %v42, 0
    %vm54 = vcmask 1044480
    %v56 = vsel %vm54, %v45, 0
    %58 = vmatpush.msra.mxu0 0.0
    %59 = vmatpush.msra.mxu0 0.0
    %60 = vmatpush.msra.mxu0 0.0
    %61 = vmatpush.msra.mxu0 0.0
    %62 = vmatpush.msra.mxu0 0.0
    %63 = vmatpush.msra.mxu0 0.0
    %64 = vmatpush.msra.mxu0 0.0
    %65 = vmatpush.msra.mxu0 0.0
    %66 = vmatpush.msra.mxu0 0.0
    %67 = vmatpush.msra.mxu0 0.0
    %68 = vmatpush.msra.mxu0 0.0
    %69 = vmatpush.msra.mxu0 0.0
    %70 = vmatpush.msra.mxu0 0.0
    %71 = vmatpush.msra.mxu0 %v56
    %72 = vmatpush.msra.mxu0 %v44
    %73 = vmatpush.msra.mxu0 %v43
    %74 = vmatmul.f32.gmra.mxu0 %v52
    %v75 = vpop.f32.mrf.mxu0
    %v76 = vadd.f32 %v48, %v75
    %77 = vdwg.mxu0
    %vm78 = vcmask 44032
    %v79 = vsel %vm78, %v76, -inf
    %80 = vmax.xlane.f32.xlu0 %v79
    %v81 = vpop.xlane.xlu0 %80
    %v82 = vsub.f32 %v76, %v81
    %v83 = vmul.f32 %v82, 1.442695
    %v84 = vpow.pop %v83
    %v85 = vsel %vm78, %v84, 0.0
    %86 = vadd.xlane.f32.xlu0 %v85
    %v87 = vpop.xlane.xlu0 %86
    %v88 = vlog2.pop %v87
    %v89 = vmul.f32 %v88, 0.6931472
    %v90 = vsub.f32 %v82, %v89
    %91 = vst.msk [vmem:[#allocation2] sm:$0xf] %vm78, %v90
    // Predicated region
    $region18: #{action_recognizer_forward.3} parent=1 // pred_check
      _
    $region19: #{action_recognizer_forward.3} parent=1 // pred_check_branch
      %93 = sbr.rel (0) target = $region21
    $region20: #{action_recognizer_forward.3} parent=1 // pred_region
      %95 = vsyncadd [#allocation3], 0
      %s97 = sshll.u32 [#allocation2], 4
      %s98 = int_to_ptr.vmem [resolvable:$true] %s97
      %s99 = sshll.u32 %s4, 4
      %s100 = int_to_ptr.hbm [resolvable:$true] %s99
      %102 = dma.vmem_to_hbm [thread:$0]  %s98, 64, %s100, [#allocation3]
    $region21: #{action_recognizer_forward.3} parent=1 // pred_fallthru
      _
    // Predicated region
    $region22: #{action_recognizer_forward.3} parent=1 // pred_check
      _
    $region23: #{action_recognizer_forward.3} parent=1 // pred_check_branch
      %104 = sbr.rel (0) target = $region25
    $region24: #{action_recognizer_forward.3} parent=1 // pred_region
      %106 = dma.done [#allocation3], 64
    $region25: #{action_recognizer_forward.3} parent=1 // pred_fallthru
      _
    %107 = vsyncpa [#allocation3], 1

// kernel: action_recognizer_forward.2
$region0: #{action_recognizer_forward.2}
  #allocation0 [shape = 'u32[]', space=smem, size = 0x4, offset = 0x4, fixed_abs, tag = 'smem constant byte address 0x4 - core index']
  #allocation1 [shape = 'u32[72,128]{1,0:T(1,128)}', space=vmem, size = 0x9000, scoped, tag = 'internal scratch']
  #allocation2 [shape = 'f32[4,21]{1,0:T(4,128)}', space=vmem, size = 0x800, scoped, tag = 'scratch operand']
  #allocation3 [shape = 'f32[4,1]{1,0:T(4,128)}', space=vmem, size = 0x800, scoped, tag = 'scratch operand']
  %s0 = inlined_call_operand.vmem [shape: s32[1,128], index: 0, kind: input, shape index: {}]
  %s1 = inlined_call_operand.vmem [shape: f32[32,21], index: 1, kind: input, shape index: {}]
  %s2 = inlined_call_operand.vmem [shape: f32[1,4,21], index: 2, kind: output, shape index: {0}]
  %s3 = inlined_call_operand.vmem [shape: f32[1,4,1], index: 3, kind: output, shape index: {1}]
  %4 = xla_tuple %s2, %s3
  %s5 = sld [smem:[#allocation0]]
  $region34: #{action_recognizer_forward.2} parent=0
    _
  %s7 = ssub.s32 1, %s5
  %s8 = scalar_select 0, %s7, %s5
  // Predicated region
  $region2: #{action_recognizer_forward.2} parent=0 // pred_check
    _
  $region3: #{action_recognizer_forward.2} parent=0 // pred_check_branch
    %10 = sbr.rel (0) target = $region5
  $region4: #{action_recognizer_forward.2} parent=0 // pred_region
    %s11 = sadd.s32 0, 0
    %p12 = scmp.lt.s32.totalorder %s11, 0
    %s13 = scalar_select %p12, %s11, 0
    %s14 = scalar_lea.vmem %s0, %s13
    %s15 = sadd.s32 0, 0
  $region5: #{action_recognizer_forward.2} parent=0 // pred_fallthru
    _
  // Predicated region
  $region6: #{action_recognizer_forward.2} parent=0 // pred_check
    _
  $region7: #{action_recognizer_forward.2} parent=0 // pred_check_branch
    %17 = sbr.rel (0) target = $region9
  $region8: #{action_recognizer_forward.2} parent=0 // pred_region
    %s18 = sadd.s32 0, 0
    %p19 = scmp.lt.s32.totalorder %s18, 0
    %s20 = scalar_select %p19, %s18, 0
    %s21 = smul.u32 16, %s20
    %s22 = ssub.s32 4, %s21
    %s23 = smul.u32 8, %s22
    %p24 = scmp.lt.s32.totalorder %s21, 3
    %s25 = scalar_select %p24, %s21, 3
    %s26 = smul.addr %s25, 8
    %s27 = scalar_lea.vmem %s1, %s26
    %s28 = sadd.s32 0, 0
    %p29 = scmp.lt.s32.totalorder %s28, 0
    %s30 = scalar_select %p29, %s28, 0
    %s31 = smul.u32 16, %s30
    %s32 = ssub.s32 4, %s31
    %s33 = smul.u32 8, %s32
  $region9: #{action_recognizer_forward.2} parent=0 // pred_fallthru
    _
  %s34 = sadd.s32 0, 0
  %p35 = scmp.lt.s32.totalorder %s34, 0
  %s36 = scalar_select %p35, %s34, 0
  %s37 = scalar_lea.vmem %s0, %s36
  %s38 = sadd.s32 0, 0
  %p39 = scmp.lt.s32.totalorder %s38, 0
  %s40 = scalar_select %p39, %s38, 0
  %s41 = smul.u32 16, %s40
  %s42 = ssub.s32 4, %s41
  %s43 = smul.u32 8, %s42
  %p44 = scmp.lt.s32.totalorder %s41, 3
  %s45 = scalar_select %p44, %s41, 3
  %s46 = smul.addr %s45, 8
  %s47 = scalar_lea.vmem %s1, %s46
  %s48 = sadd.s32 0, 0
  %p49 = scmp.lt.s32.totalorder %s48, 0
  %s50 = scalar_select %p49, %s48, 0
  %s51 = scalar_lea.vmem %s0, %s50
  %s52 = sadd.s32 0, 0
  %s53 = sadd.s32 0, 0
  %p54 = scmp.lt.s32.totalorder %s53, 0
  %s55 = scalar_select %p54, %s53, 0
  %s56 = smul.u32 16, %s55
  %s57 = ssub.s32 4, %s56
  %s58 = smul.u32 8, %s57
  %p59 = scmp.lt.s32.totalorder %s56, 3
  %s60 = scalar_select %p59, %s56, 3
  %s61 = smul.addr %s60, 8
  %s62 = scalar_lea.vmem %s1, %s61
  %s63 = sadd.s32 0, 0
  %p64 = scmp.lt.s32.totalorder %s63, 0
  %s65 = scalar_select %p64, %s63, 0
  %s66 = smul.u32 16, %s65
  %s67 = ssub.s32 4, %s66
  %s68 = smul.u32 8, %s67
  %p69 = scmp.eq.s32.totalorder 0, 0
  // Predicated region
  $region10: #{action_recognizer_forward.2} parent=0 // pred_check
    %p70 = pneg %p69
  $region11: #{action_recognizer_forward.2} parent=0 // pred_check_branch
    %72 = sbr.rel (%p70) target = $region13
  $region12: #{action_recognizer_forward.2} parent=0 // pred_region
    %vm73 = vcmask 166912
    %74 = vst.msk [vmem:[#allocation2] sm:$0xf] %vm73, 0.0
    %vm75 = vcmask 3072
    %76 = vst.msk [vmem:[#allocation3] sm:$0xf] %vm75, 0.0
  $region13: #{action_recognizer_forward.2} parent=0 // pred_fallthru
    _
  %v77 = vld [vmem:[%s51] sm:$0x1]
  %v78 = vlaneseq
  %v79 = vshrl.u32 %v78, 7
  %v80 = vperm.slane %v77, 0
  %vm81 = vcmp.eq.s32.totalorder %v79, %v80
  %v82 = vsel %vm81, 1, 0
  %v83 = vcvt.s32.f32 %v82
  %s84 = sadd.s32 0, 0
  %s85 = smul.u32 %s84, 128
  %v86 = vadd.s32 %v79, 8
  %v87 = vadd.s32 %v79, 16
  %v88 = vadd.s32 %v79, 24
  %v89 = vadd.s32 %v79, 32
  %v90 = vadd.s32 %v79, 40
  %v91 = vadd.s32 %v79, 48
  %v92 = vadd.s32 %v79, 56
  %v93 = vadd.s32 %v79, 64
  %v94 = vadd.s32 %v79, 72
  %v95 = vadd.s32 %v79, 80
  %v96 = vadd.s32 %v79, 88
  %v97 = vadd.s32 %v79, 96
  %v98 = vadd.s32 %v79, 104
  %v99 = vadd.s32 %v79, 112
  %v100 = vadd.s32 %v79, 120
  %v101 = vstv %s85
  %v102 = vadd.s32 %v79, %v101
  %v103 = vadd.s32 %v86, %v101
  %v104 = vadd.s32 %v87, %v101
  %v105 = vadd.s32 %v88, %v101
  %v106 = vadd.s32 %v89, %v101
  %v107 = vadd.s32 %v90, %v101
  %v108 = vadd.s32 %v91, %v101
  %v109 = vadd.s32 %v92, %v101
  %v110 = vadd.s32 %v93, %v101
  %v111 = vadd.s32 %v94, %v101
  %v112 = vadd.s32 %v95, %v101
  %v113 = vadd.s32 %v96, %v101
  %v114 = vadd.s32 %v97, %v101
  %v115 = vadd.s32 %v98, %v101
  %v116 = vadd.s32 %v99, %v101
  %v117 = vadd.s32 %v100, %v101
  %vm118 = vcmp.lt.s32.totalorder %v102, 32
  %vm119 = vcmp.lt.s32.totalorder %v103, 32
  %vm120 = vcmp.lt.s32.totalorder %v104, 32
  %vm121 = vcmp.lt.s32.totalorder %v105, 32
  %vm122 = vcmp.lt.s32.totalorder %v106, 32
  %vm123 = vcmp.lt.s32.totalorder %v107, 32
  %vm124 = vcmp.lt.s32.totalorder %v108, 32
  %vm125 = vcmp.lt.s32.totalorder %v109, 32
  %vm126 = vcmp.lt.s32.totalorder %v110, 32
  %vm127 = vcmp.lt.s32.totalorder %v111, 32
  %vm128 = vcmp.lt.s32.totalorder %v112, 32
  %vm129 = vcmp.lt.s32.totalorder %v113, 32
  %vm130 = vcmp.lt.s32.totalorder %v114, 32
  %vm131 = vcmp.lt.s32.totalorder %v115, 32
  %vm132 = vcmp.lt.s32.totalorder %v116, 32
  %vm133 = vcmp.lt.s32.totalorder %v117, 32
  %v134 = vld [vmem:[%s62] sm:$0xff]
  %v135 = vld [vmem:[%s62 + $0x8] sm:$0xff]
  %v136 = vld [vmem:[%s62 + $0x10] sm:$0xff]
  %v137 = vld [vmem:[%s62 + $0x18] sm:$0xff]
  %v138 = vld [vmem:[%s62 + $0x20] sm:$0xff]
  %v139 = vld [vmem:[%s62 + $0x28] sm:$0xff]
  %v140 = vld [vmem:[%s62 + $0x30] sm:$0xff]
  %v141 = vld [vmem:[%s62 + $0x38] sm:$0xff]
  %v142 = vld [vmem:[%s62 + $0x40] sm:$0xff]
  %v143 = vld [vmem:[%s62 + $0x48] sm:$0xff]
  %v144 = vld [vmem:[%s62 + $0x50] sm:$0xff]
  %v145 = vld [vmem:[%s62 + $0x58] sm:$0xff]
  %v146 = vld [vmem:[%s62 + $0x60] sm:$0xff]
  %v147 = vld [vmem:[%s62 + $0x68] sm:$0xff]
  %v148 = vld [vmem:[%s62 + $0x70] sm:$0xff]
  %v149 = vld [vmem:[%s62 + $0x78] sm:$0xff]
  %v150 = vsel %vm118, %v134, 0.0
  %v151 = vsel %vm119, %v135, 0.0
  %v152 = vsel %vm120, %v136, 0.0
  %v153 = vsel %vm121, %v137, 0.0
  %v154 = vsel %vm122, %v138, 0.0
  %v155 = vsel %vm123, %v139, 0.0
  %v156 = vsel %vm124, %v140, 0.0
  %v157 = vsel %vm125, %v141, 0.0
  %v158 = vsel %vm126, %v142, 0.0
  %v159 = vsel %vm127, %v143, 0.0
  %v160 = vsel %vm128, %v144, 0.0
  %v161 = vsel %vm129, %v145, 0.0
  %v162 = vsel %vm130, %v146, 0.0
  %v163 = vsel %vm131, %v147, 0.0
  %v164 = vsel %vm132, %v148, 0.0
  %v165 = vsel %vm133, %v149, 0.0
  %v166 = vld [vmem:[#allocation2] sm:$0xf]
  %167 = vmatpush.msra.mxu0 %v165
  %168 = vmatpush.msra.mxu0 %v164
  %169 = vmatpush.msra.mxu0 %v163
  %170 = vmatpush.msra.mxu0 %v162
  %171 = vmatpush.msra.mxu0 %v161
  %172 = vmatpush.msra.mxu0 %v160
  %173 = vmatpush.msra.mxu0 %v159
  %174 = vmatpush.msra.mxu0 %v158
  %175 = vmatpush.msra.mxu0 %v157
  %176 = vmatpush.msra.mxu0 %v156
  %177 = vmatpush.msra.mxu0 %v155
  %178 = vmatpush.msra.mxu0 %v154
  %179 = vmatpush.msra.mxu0 %v153
  %180 = vmatpush.msra.mxu0 %v152
  %181 = vmatpush.msra.mxu0 %v151
  %182 = vmatpush.msra.mxu0 %v150
  %183 = vmatmul.f32.gmra.mxu0 %v83
  %v184 = vpop.f32.mrf.mxu0
  %v185 = vadd.f32 0.0, %v184
  %186 = vdwg.mxu0
  %v187 = vadd.f32 %v166, %v185
  %vm188 = vcmask 166912
  %189 = vst.msk [vmem:[#allocation2] sm:$0xf] %vm188, %v187
  %v190 = vld [vmem:[#allocation3] sm:$0xf]
  %vm191 = vcmask 1043456
  %v192 = vsel %vm191, %v83, 0.0
  %193 = vadd.xlane.f32.xlu0 %v192
  %v194 = vpop.xlane.xlu0 %193
  %v195 = vadd.f32 %v190, %v194
  %vm196 = vcmask 3072
  %197 = vst.msk [vmem:[#allocation3] sm:$0xf] %vm196, %v195
  // Predicated region
  $region14: #{action_recognizer_forward.2} parent=0 // pred_check
    %p198 = pneg %p69
  $region15: #{action_recognizer_forward.2} parent=0 // pred_check_branch
    %200 = sbr.rel (%p198) target = $region17
  $region16: #{action_recognizer_forward.2} parent=0 // pred_region
    %v201 = vld [vmem:[#allocation2] sm:$0xf]
    %202 = vst.msk [vmem:[%s2] sm:$0xf] %vm188, %v201
    %v203 = vld [vmem:[#allocation3] sm:$0xf]
    %204 = vst.msk [vmem:[%s3] sm:$0xf] %vm196, %v203
  $region17: #{action_recognizer_forward.2} parent=0 // pred_fallthru
    _
  // Predicated region
  $region18: #{action_recognizer_forward.2} parent=0 // pred_check
    _
  $region19: #{action_recognizer_forward.2} parent=0 // pred_check_branch
    %206 = sbr.rel (0) target = $region21
  $region20: #{action_recognizer_forward.2} parent=0 // pred_region
    _
  $region21: #{action_recognizer_forward.2} parent=0 // pred_fallthru
    _
  // Predicated region
  $region22: #{action_recognizer_forward.2} parent=0 // pred_check
    _
  $region23: #{action_recognizer_forward.2} parent=0 // pred_check_branch
    %208 = sbr.rel (0) target = $region25
  $region24: #{action_recognizer_forward.2} parent=0 // pred_region
    _
  $region25: #{action_recognizer_forward.2} parent=0 // pred_fallthru
    _
  // Predicated region
  $region26: #{action_recognizer_forward.2} parent=0 // pred_check
    _
  $region27: #{action_recognizer_forward.2} parent=0 // pred_check_branch
    %210 = sbr.rel (0) target = $region29
  $region28: #{action_recognizer_forward.2} parent=0 // pred_region
    _
  $region29: #{action_recognizer_forward.2} parent=0 // pred_fallthru
    _
  // Predicated region
  $region30: #{action_recognizer_forward.2} parent=0 // pred_check
    _
  $region31: #{action_recognizer_forward.2} parent=0 // pred_check_branch
    %212 = sbr.rel (0) target = $region33
  $region32: #{action_recognizer_forward.2} parent=0 // pred_region
    _
  $region33: #{action_recognizer_forward.2} parent=0 // pred_fallthru
    _

</llo_original>
